<compile_context>
chip_gen: v6e
topology: v6e:2x2x1
jax: 0.10.0
libtpu: 0.0.40
codegen_flags: <defaults>
</compile_context>

<pallas_src>
import functools

import jax
import jax.numpy as jnp
from jax import lax
from jax.experimental import pallas as pl
from jax.experimental.pallas import tpu as pltpu


# ----------------------------------------------------------------------------
# Generation-aware tiling helpers
# ----------------------------------------------------------------------------
_LANE = 128
_TILE_CANDIDATES = (8192, 4096, 2048, 1024, 512, 256, 128)


def _round_up(x: int, m: int) -> int:
    return ((x + m - 1) // m) * m


def _vmem_budget():
    """(tile_budget_bytes, vmem_limit_bytes) derived from the chip's VMEM.

    v5e/v6e: 128 MiB physical -> ~40 MiB of tiles, 64 MiB scoped limit.
    v7x    :  64 MiB physical -> ~21 MiB of tiles, 32 MiB scoped limit.
    """
    try:
        cap = int(pltpu.get_tpu_info().vmem_capacity_bytes)
    except Exception:  # query unavailable: assume the smallest (v7x) VMEM
        cap = 64 * 1024 * 1024
    tile_budget = min(cap // 3, 40 * 1024 * 1024)
    vmem_limit = min(cap // 2, 64 * 1024 * 1024)
    return tile_budget, vmem_limit


def _choose_tile_n(dim: int, padded_size: int, tile_budget_bytes: int) -> int:
    """Largest lane tile dividing padded_size whose double-buffered in+out
    footprint (4 * dim * tile * 4 B) fits the budget.  padded_size is a
    multiple of 128, so the 128 floor always divides."""
    for cand in _TILE_CANDIDATES:
        if padded_size % cand == 0 and 4 * dim * cand * 4 <= tile_budget_bytes:
            return cand
    return _LANE


# ----------------------------------------------------------------------------
# Kernel 1: fused bank init (in-kernel randn + column L2 normalize, write-only)
# ----------------------------------------------------------------------------
def _init_bank_kernel(seed_ref, o_ref):
    # Distinct PRNG stream per lane tile: deterministic under megacore sharding.
    pltpu.prng_seed(seed_ref[0] + pl.program_id(0))
    x = pltpu.stateful_normal(o_ref.shape, jnp.float32)      # (dim, tile_n)
    ssq = jnp.sum(x * x, axis=0, keepdims=True)               # reduce over dim
    # F.normalize eps: x / max(||x||, 1e-12) == x * rsqrt(max(ssq, 1e-24))
    o_ref[...] = x * lax.rsqrt(jnp.maximum(ssq, 1e-24))


def init_bank(dim: int, size: int, seed: int) -> jax.Array:
    padded = _round_up(size, _LANE)
    tile_budget, vmem_limit = _vmem_budget()
    # Only the (double-buffered) output tile lives in VMEM here -> 2x headroom.
    tile_n = _choose_tile_n(dim, padded, 2 * tile_budget)
    out = pl.pallas_call(
        _init_bank_kernel,
        out_shape=jax.ShapeDtypeStruct((dim, padded), jnp.float32),
        grid_spec=pltpu.PrefetchScalarGridSpec(
            num_scalar_prefetch=1,
            grid=(padded // tile_n,),
            in_specs=[],
            out_specs=pl.BlockSpec((dim, tile_n), lambda j, seed: (0, j)),
        ),
        compiler_params=pltpu.CompilerParams(
            dimension_semantics=("parallel",),
            vmem_limit_bytes=vmem_limit,
        ),
    )(jnp.asarray([seed], jnp.int32))
    return out[:, :size] if padded != size else out


# ----------------------------------------------------------------------------
# Kernel 2: column-wise L2 normalization (fallback init path)
# ----------------------------------------------------------------------------
def _normalize_kernel(x_ref, o_ref):
    x = x_ref[...]                                            # (dim, tile_n)
    ssq = jnp.sum(x * x, axis=0, keepdims=True)
    o_ref[...] = x * lax.rsqrt(jnp.maximum(ssq, 1e-24))


def normalize_bank(raw_bank: jax.Array) -> jax.Array:
    dim, size = raw_bank.shape
    padded = _round_up(size, _LANE)
    if padded != size:
        raw_bank = jnp.pad(raw_bank, ((0, 0), (0, padded - size)))
    tile_budget, vmem_limit = _vmem_budget()
    tile_n = _choose_tile_n(dim, padded, tile_budget)
    out = pl.pallas_call(
        _normalize_kernel,
        out_shape=jax.ShapeDtypeStruct((dim, padded), jnp.float32),
        grid=(padded // tile_n,),
        in_specs=[pl.BlockSpec((dim, tile_n), lambda j: (0, j))],
        out_specs=pl.BlockSpec((dim, tile_n), lambda j: (0, j)),
        compiler_params=pltpu.CompilerParams(
            dimension_semantics=("parallel",),
            vmem_limit_bytes=vmem_limit,
        ),
    )(raw_bank)
    return out[:, :size] if padded != size else out


# ----------------------------------------------------------------------------
# Kernel 3: dequeue-and-enqueue (window-only DMA into the HBM-resident bank)
# ----------------------------------------------------------------------------
def _enqueue_kernel(ptr_ref, batch_ref, bank_in_ref, bank_out_ref, new_ptr_ref,
                    copy_sem, *, batch_size, size, rem):
    del bank_in_ref  # aliased with bank_out_ref; all writes use the output ref
    ptr = ptr_ref[0]
    wrap = ptr + batch_size >= size
    # Scalar pointer update first: keep SMEM work ahead of the DMA wait.
    new_ptr_ref[0] = jnp.where(wrap, 0, ptr + batch_size)

    if rem == batch_size:
        # size % batch_size == 0: the wrap write is also a full-batch write and
        # ptr + batch_size <= size always holds -> one unconditional DMA.
        cp = pltpu.make_async_copy(
            batch_ref, bank_out_ref.at[:, pl.ds(ptr, batch_size)], copy_sem)
        cp.start()
        cp.wait()
    else:
        @pl.when(jnp.logical_not(wrap))
        def _full_write():
            cp = pltpu.make_async_copy(
                batch_ref, bank_out_ref.at[:, pl.ds(ptr, batch_size)], copy_sem)
            cp.start()
            cp.wait()

        @pl.when(wrap)
        def _wrap_write():
            # ptr is always a multiple of the (constant) batch size, so the
            # wrap length size - ptr == size % batch_size is a compile-time
            # constant -> single static-size DMA, no per-column loop.
            cp = pltpu.make_async_copy(
                batch_ref.at[:, pl.ds(0, rem)],
                bank_out_ref.at[:, pl.ds(ptr, rem)],
                copy_sem)
            cp.start()
            cp.wait()


def _enqueue(bank, batch_t, bank_ptr):
    """bank: (dim, size) f32 in HBM; batch_t: (dim, B) f32; bank_ptr: (1,) i32."""
    dim, size = bank.shape
    _, batch_size = batch_t.shape
    rem = size % batch_size
    if rem == 0:
        rem = batch_size                       # exact wrap writes the full batch
    kernel = functools.partial(_enqueue_kernel, batch_size=batch_size,
                               size=size, rem=rem)
    new_bank, new_ptr = pl.pallas_call(
        kernel,
        out_shape=(
            jax.ShapeDtypeStruct((dim, size), jnp.float32),
            jax.ShapeDtypeStruct((1,), jnp.int32),
        ),
        in_specs=[
            pl.BlockSpec(memory_space=pltpu.SMEM),   # bank_ptr (scalar)
            pl.BlockSpec(memory_space=pltpu.VMEM),   # batch_t (dim, B) -- tiny
            pl.BlockSpec(memory_space=pl.ANY),       # bank stays in HBM
        ],
        out_specs=(
            pl.BlockSpec(memory_space=pl.ANY),       # new bank (aliased, HBM)
            pl.BlockSpec(memory_space=pltpu.SMEM),   # new ptr
        ),
        scratch_shapes=[pltpu.SemaphoreType.DMA(())],
        input_output_aliases={2: 0},                 # bank -> new bank
    )(bank_ptr, batch_t, bank)
    return new_bank, new_ptr


@jax.jit
def _update_step(bank, batch, bank_ptr):
    """Spec-faithful update.  Non-donated aliased input => XLA materializes
    exactly ONE full-bank copy (that copy IS the `.clone()` the PyTorch forward
    performs) and the kernel writes the (dim, B) window into it in place.
    The batch transpose is KB-sized and fuses inside this jitted step."""
    return _enqueue(bank, batch.astype(jnp.float32).T, bank_ptr)


@functools.partial(jax.jit, donate_argnums=(0,))
def _update_step_inplace(bank, batch, bank_ptr):
    """Donated variant: the bank buffer is reused (input_output_aliases
    honored), so the update is truly in place -- HBM traffic is only the
    (dim, B) window.  Invalidates bank arrays returned by earlier forward()
    calls; use only when the pre-update snapshot is not needed."""
    return _enqueue(bank, batch.astype(jnp.float32).T, bank_ptr)


# ----------------------------------------------------------------------------
# Module wrapper (state management, mirrors MemoryBankModule.forward)
# ----------------------------------------------------------------------------
class MemoryBankPallas:
    def __init__(self, size: int = 2 ** 16, seed: int = 0):
        if size < 0:
            raise ValueError(f"Illegal memory bank size {size}, must be non-negative.")
        self.size = size
        self.seed = seed
        self.bank = None                               # lazily initialized
        self.bank_ptr = jnp.zeros((1,), jnp.int32)
        self._update_batch = None                      # constant-B invariant

    def _init_memory_bank(self, dim: int) -> None:
        try:
            bank = jax.block_until_ready(init_bank(dim, self.size, self.seed))
        except Exception:
            # Stateful-PRNG path unavailable on this runtime: two-pass fallback
            # (jax.random.normal raw bank + Pallas normalize kernel).
            raw = jax.random.normal(jax.random.PRNGKey(self.seed),
                                    (dim, self.size), dtype=jnp.float32)
            bank = normalize_bank(raw)
        self.bank = bank
        self.bank_ptr = jnp.zeros((1,), jnp.int32)

    def _check_batch_size(self, batch_size: int) -> None:
        # The single static-size wrap DMA relies on ptr always being a multiple
        # of the update batch size, i.e. a constant B across updates.
        # TODO(synk): dynamic-length wrap write (Pallas slice sizes must be
        # static) to support a varying update batch size.
        if self._update_batch is None:
            self._update_batch = batch_size
        elif self._update_batch != batch_size:
            raise ValueError(
                "MemoryBankPallas requires a constant update batch size "
                f"(got {batch_size}, previously {self._update_batch}).")

    def __call__(self, output, labels=None, update: bool = False):
        if self.size == 0:
            return output, None
        _, dim = output.shape
        if self.bank is None:
            self._init_memory_bank(dim)
        # "bank.clone().detach()": this path never mutates buffers in place and
        # JAX arrays are immutable, so the current handle is the clone (free).
        bank_snapshot = self.bank
        if update:
            self._check_batch_size(output.shape[0])
            self.bank, self.bank_ptr = _update_step(self.bank, output, self.bank_ptr)
        return output, bank_snapshot

    def update_only(self, output) -> None:
        """Zero-copy enqueue (donated + aliased, truly in place).  Only use when
        the pre-update negatives snapshot is not needed; invalidates bank
        arrays returned by previous __call__ invocations."""
        if self.size == 0:
            return
        _, dim = output.shape
        if self.bank is None:
            self._init_memory_bank(dim)
        self._check_batch_size(output.shape[0])
        self.bank, self.bank_ptr = _update_step_inplace(self.bank, output, self.bank_ptr)


# ----------------------------------------------------------------------------
if __name__ == "__main__":
    batch, dim, bank_size = 8, 32, 256

    key = jax.random.PRNGKey(0)
    output = jax.random.normal(key, (batch, dim), dtype=jnp.float32)

    mb = MemoryBankPallas(size=bank_size, seed=0)

    # First call: initializes the bank (fused Pallas randn+normalize), returns
    # the pre-update bank, and enqueues `output` into columns [0:batch).
    out1, bank1 = mb(output, update=True)
    out1 = jax.block_until_ready(out1)
    bank1 = jax.block_until_ready(bank1)
    new_bank = jax.block_until_ready(mb.bank)
    new_ptr = jax.block_until_ready(mb.bank_ptr)

    assert out1.shape == (batch, dim)
    assert bank1.shape == (dim, bank_size)
    norms = jnp.linalg.norm(bank1, axis=0)
    assert bool(jnp.allclose(norms, 1.0, atol=1e-5)), "bank columns not unit-norm"
    assert bool(jnp.allclose(new_bank[:, :batch], output.T, atol=1e-6)), \
        "enqueue did not write batch.T at ptr=0"
    assert bool(jnp.allclose(new_bank[:, batch:], bank1[:, batch:], atol=1e-6)), \
        "enqueue modified columns outside [ptr, ptr+batch)"
    assert int(new_ptr[0]) == batch, "bank_ptr not advanced"

    # Second call without update: bank returned unchanged; earlier snapshot valid.
    out2, bank2 = mb(output, update=False)
    jax.block_until_ready(bank2)
    assert bool(jnp.allclose(bank2, new_bank))

    # Wrap-around path (size % batch != 0): one static-size partial DMA, ptr -> 0.
    mb_small = MemoryBankPallas(size=20, seed=1)
    xb = jax.random.normal(jax.random.PRNGKey(1), (batch, dim), dtype=jnp.float32)
    mb_small(xb, update=True)   # ptr 0 -> 8
    mb_small(xb, update=True)   # ptr 8 -> 16
    pre_wrap = jax.block_until_ready(mb_small.bank)
    mb_small(xb, update=True)   # 16 + 8 >= 20 -> write 4 cols, ptr -> 0
    post_wrap = jax.block_until_ready(mb_small.bank)
    assert int(mb_small.bank_ptr[0]) == 0, "bank_ptr not reset on wrap"
    assert bool(jnp.allclose(post_wrap[:, 16:20], xb[:4].T, atol=1e-6)), \
        "wrap write incorrect"
    assert bool(jnp.allclose(post_wrap[:, :16], pre_wrap[:, :16], atol=1e-6)), \
        "wrap write touched columns outside [ptr, size)"

    # Donated, truly in-place update path (no pre-update snapshot needed).
    mb_ip = MemoryBankPallas(size=bank_size, seed=2)
    mb_ip(output, update=False)                          # init only
    before = jax.block_until_ready(jnp.array(mb_ip.bank, copy=True))
    mb_ip.update_only(output)
    after = jax.block_until_ready(mb_ip.bank)
    assert int(mb_ip.bank_ptr[0]) == batch, "in-place bank_ptr not advanced"
    assert bool(jnp.allclose(after[:, :batch], output.T, atol=1e-6)), \
        "in-place enqueue did not write batch.T"
    assert bool(jnp.allclose(after[:, batch:], before[:, batch:], atol=1e-6)), \
        "in-place enqueue touched columns outside the window"

    print("KERNEL_OK")
</pallas_src>

<mosaic_0001>
module attributes {stable_mosaic.version = 11 : i64} {
  func.func @_init_bank_kernel(%arg0: i32, %arg1: memref<1xi32, #tpu.memory_space<smem>>, %arg2: memref<32x256xf32, #tpu.memory_space<vmem>>) attributes {dimension_semantics = [#tpu.dimension_semantics<parallel>], iteration_bounds = array<i64: 1>, scalar_prefetch = 1 : i64, scratch_operands = 0 : i64, tpu.core_type = #tpu.core_type<tc>, window_params = [{transform_indices = @transform_0, window_bounds = array<i64: 32, 256>}]} {
    %c0 = arith.constant 0 : index
    %0 = memref.load %arg1[%c0] : memref<1xi32, #tpu.memory_space<smem>>
    %1 = arith.addi %0, %arg0 : i32
    "tpu.prng_set_seed_32"(%1) : (i32) -> ()
    %c0_i32 = arith.constant 0 : i32
    %c0_i32_0 = arith.constant 0 : i32
    %cst = arith.constant -0.99999994 : f32
    %cst_1 = arith.constant 1.000000e+00 : f32
    %2 = vector.broadcast %cst : f32 to vector<1x1xf32>
    %3 = vector.broadcast %cst_1 : f32 to vector<1x1xf32>
    %4 = "tpu.prng_random_bits"() : () -> vector<32x256xi32>
    %c9_i32 = arith.constant 9 : i32
    %5 = vector.broadcast %c9_i32 : i32 to vector<32x256xi32>
    %6 = arith.shrui %4, %5 : vector<32x256xi32>
    %c1065353216_i32 = arith.constant 1065353216 : i32
    %7 = vector.broadcast %c1065353216_i32 : i32 to vector<32x256xi32>
    %8 = arith.ori %6, %7 : vector<32x256xi32>
    %9 = tpu.bitcast %8 : vector<32x256xi32> -> vector<32x256xf32>
    %cst_2 = arith.constant 1.000000e+00 : f32
    %10 = vector.broadcast %cst_2 : f32 to vector<32x256xf32>
    %11 = arith.subf %9, %10 : vector<32x256xf32>
    %12 = arith.subf %3, %2 : vector<1x1xf32>
    %13 = vector.broadcast %12 : vector<1x1xf32> to vector<32x256xf32>
    %14 = arith.mulf %11, %13 : vector<32x256xf32>
    %15 = vector.broadcast %2 : vector<1x1xf32> to vector<32x256xf32>
    %16 = arith.addf %14, %15 : vector<32x256xf32>
    %17 = vector.broadcast %2 : vector<1x1xf32> to vector<32x256xf32>
    %18 = arith.maximumf %17, %16 : vector<32x256xf32>
    %cst_3 = arith.constant 0.000000e+00 : f32
    %19 = vector.broadcast %cst_3 : f32 to vector<32x256xf32>
    %20 = arith.subf %19, %18 : vector<32x256xf32>
    %21 = arith.mulf %18, %20 : vector<32x256xf32>
    %22 = math.log1p %21 : vector<32x256xf32>
    %cst_4 = arith.constant 0.000000e+00 : f32
    %23 = vector.broadcast %cst_4 : f32 to vector<32x256xf32>
    %24 = arith.subf %23, %22 : vector<32x256xf32>
    %cst_5 = arith.constant 5.000000e+00 : f32
    %25 = vector.broadcast %cst_5 : f32 to vector<32x256xf32>
    %26 = arith.cmpf olt, %24, %25 : vector<32x256xf32>
    %cst_6 = arith.constant 2.500000e+00 : f32
    %27 = vector.broadcast %cst_6 : f32 to vector<32x256xf32>
    %28 = arith.subf %24, %27 : vector<32x256xf32>
    %29 = math.sqrt %24 : vector<32x256xf32>
    %cst_7 = arith.constant 3.000000e+00 : f32
    %30 = vector.broadcast %cst_7 : f32 to vector<32x256xf32>
    %31 = arith.subf %29, %30 : vector<32x256xf32>
    %32 = arith.select %26, %28, %31 : vector<32x256xi1>, vector<32x256xf32>
    %cst_8 = arith.constant 2.81022636E-8 : f32
    %cst_9 = arith.constant -2.00214257E-4 : f32
    %33 = vector.broadcast %cst_8 : f32 to vector<32x256xf32>
    %34 = vector.broadcast %cst_9 : f32 to vector<32x256xf32>
    %35 = arith.select %26, %33, %34 : vector<32x256xi1>, vector<32x256xf32>
    %cst_10 = arith.constant 3.43273939E-7 : f32
    %cst_11 = arith.constant 1.00950558E-4 : f32
    %36 = vector.broadcast %cst_10 : f32 to vector<32x256xf32>
    %37 = vector.broadcast %cst_11 : f32 to vector<32x256xf32>
    %38 = arith.select %26, %36, %37 : vector<32x256xi1>, vector<32x256xf32>
    %39 = arith.mulf %35, %32 : vector<32x256xf32>
    %40 = arith.addf %38, %39 : vector<32x256xf32>
    %cst_12 = arith.constant -3.5233877E-6 : f32
    %cst_13 = arith.constant 0.00134934322 : f32
    %41 = vector.broadcast %cst_12 : f32 to vector<32x256xf32>
    %42 = vector.broadcast %cst_13 : f32 to vector<32x256xf32>
    %43 = arith.select %26, %41, %42 : vector<32x256xi1>, vector<32x256xf32>
    %44 = arith.mulf %40, %32 : vector<32x256xf32>
    %45 = arith.addf %43, %44 : vector<32x256xf32>
    %cst_14 = arith.constant -4.39150654E-6 : f32
    %cst_15 = arith.constant -0.00367342844 : f32
    %46 = vector.broadcast %cst_14 : f32 to vector<32x256xf32>
    %47 = vector.broadcast %cst_15 : f32 to vector<32x256xf32>
    %48 = arith.select %26, %46, %47 : vector<32x256xi1>, vector<32x256xf32>
    %49 = arith.mulf %45, %32 : vector<32x256xf32>
    %50 = arith.addf %48, %49 : vector<32x256xf32>
    %cst_16 = arith.constant 2.1858087E-4 : f32
    %cst_17 = arith.constant 0.00573950773 : f32
    %51 = vector.broadcast %cst_16 : f32 to vector<32x256xf32>
    %52 = vector.broadcast %cst_17 : f32 to vector<32x256xf32>
    %53 = arith.select %26, %51, %52 : vector<32x256xi1>, vector<32x256xf32>
    %54 = arith.mulf %50, %32 : vector<32x256xf32>
    %55 = arith.addf %53, %54 : vector<32x256xf32>
    %cst_18 = arith.constant -0.00125372503 : f32
    %cst_19 = arith.constant -0.0076224613 : f32
    %56 = vector.broadcast %cst_18 : f32 to vector<32x256xf32>
    %57 = vector.broadcast %cst_19 : f32 to vector<32x256xf32>
    %58 = arith.select %26, %56, %57 : vector<32x256xi1>, vector<32x256xf32>
    %59 = arith.mulf %55, %32 : vector<32x256xf32>
    %60 = arith.addf %58, %59 : vector<32x256xf32>
    %cst_20 = arith.constant -0.00417768164 : f32
    %cst_21 = arith.constant 0.00943887047 : f32
    %61 = vector.broadcast %cst_20 : f32 to vector<32x256xf32>
    %62 = vector.broadcast %cst_21 : f32 to vector<32x256xf32>
    %63 = arith.select %26, %61, %62 : vector<32x256xi1>, vector<32x256xf32>
    %64 = arith.mulf %60, %32 : vector<32x256xf32>
    %65 = arith.addf %63, %64 : vector<32x256xf32>
    %cst_22 = arith.constant 0.246640727 : f32
    %cst_23 = arith.constant 1.00167406 : f32
    %66 = vector.broadcast %cst_22 : f32 to vector<32x256xf32>
    %67 = vector.broadcast %cst_23 : f32 to vector<32x256xf32>
    %68 = arith.select %26, %66, %67 : vector<32x256xi1>, vector<32x256xf32>
    %69 = arith.mulf %65, %32 : vector<32x256xf32>
    %70 = arith.addf %68, %69 : vector<32x256xf32>
    %cst_24 = arith.constant 1.50140941 : f32
    %cst_25 = arith.constant 2.83297682 : f32
    %71 = vector.broadcast %cst_24 : f32 to vector<32x256xf32>
    %72 = vector.broadcast %cst_25 : f32 to vector<32x256xf32>
    %73 = arith.select %26, %71, %72 : vector<32x256xi1>, vector<32x256xf32>
    %74 = arith.mulf %70, %32 : vector<32x256xf32>
    %75 = arith.addf %73, %74 : vector<32x256xf32>
    %76 = math.absf %18 : vector<32x256xf32>
    %cst_26 = arith.constant 1.000000e+00 : f32
    %77 = vector.broadcast %cst_26 : f32 to vector<32x256xf32>
    %78 = arith.cmpf oeq, %76, %77 : vector<32x256xf32>
    %cst_27 = arith.constant 0x7F800000 : f32
    %79 = vector.broadcast %cst_27 : f32 to vector<32x256xf32>
    %80 = arith.mulf %79, %18 : vector<32x256xf32>
    %81 = arith.mulf %75, %18 : vector<32x256xf32>
    %82 = arith.select %78, %80, %81 : vector<32x256xi1>, vector<32x256xf32>
    %cst_28 = arith.constant 1.41421354 : f32
    %83 = vector.broadcast %cst_28 : f32 to vector<32x256xf32>
    %84 = arith.mulf %83, %82 : vector<32x256xf32>
    %85 = arith.mulf %84, %84 : vector<32x256xf32>
    %cst_29 = arith.constant dense<0.000000e+00> : vector<256xf32>
    %86 = vector.multi_reduction <add>, %85, %cst_29 [0] : vector<32x256xf32> to vector<256xf32>
    %87 = vector.shape_cast %86 : vector<256xf32> to vector<1x256xf32>
    %cst_30 = arith.constant 1.000000e-24 : f32
    %88 = vector.broadcast %cst_30 : f32 to vector<1x256xf32>
    %89 = arith.maximumf %87, %88 : vector<1x256xf32>
    %90 = math.rsqrt %89 : vector<1x256xf32>
    %91 = vector.broadcast %90 : vector<1x256xf32> to vector<32x256xf32>
    %92 = arith.mulf %84, %91 : vector<32x256xf32>
    %c0_31 = arith.constant 0 : index
    %c0_32 = arith.constant 0 : index
    %93 = vector.load %arg2[%c0_31, %c0_32] : memref<32x256xf32, #tpu.memory_space<vmem>>, vector<32x256xf32>
    tpu.vector_store %arg2[%c0_31, %c0_32], %92 {strides = array<i32>} : memref<32x256xf32, #tpu.memory_space<vmem>>, vector<32x256xf32>,
    return
  }
  func.func @transform_0(%arg0: i32, %arg1: memref<1xi32, #tpu.memory_space<smem>>) -> (i32, i32) {
    %c0_i32 = arith.constant 0 : i32
    %c0_i32_0 = arith.constant 0 : i32
    return %c0_i32, %arg0 : i32, i32
  }
}

module attributes {stable_mosaic.version = 11 : i64} {
  func.func @_normalize_kernel(%arg0: i32, %arg1: memref<32x256xf32, #tpu.memory_space<vmem>>, %arg2: memref<32x256xf32, #tpu.memory_space<vmem>>) attributes {dimension_semantics = [#tpu.dimension_semantics<parallel>], iteration_bounds = array<i64: 1>, scalar_prefetch = 0 : i64, scratch_operands = 0 : i64, tpu.core_type = #tpu.core_type<tc>, window_params = [{transform_indices = @transform_0, window_bounds = array<i64: 32, 256>}, {transform_indices = @transform_1, window_bounds = array<i64: 32, 256>}]} {
    %c0 = arith.constant 0 : index
    %c0_0 = arith.constant 0 : index
    %0 = vector.load %arg1[%c0, %c0_0] : memref<32x256xf32, #tpu.memory_space<vmem>>, vector<32x256xf32>
    %1 = arith.mulf %0, %0 : vector<32x256xf32>
    %cst = arith.constant dense<0.000000e+00> : vector<256xf32>
    %2 = vector.multi_reduction <add>, %1, %cst [0] : vector<32x256xf32> to vector<256xf32>
    %3 = vector.shape_cast %2 : vector<256xf32> to vector<1x256xf32>
    %cst_1 = arith.constant 1.000000e-24 : f32
    %4 = vector.broadcast %cst_1 : f32 to vector<1x256xf32>
    %5 = arith.maximumf %3, %4 : vector<1x256xf32>
    %6 = math.rsqrt %5 : vector<1x256xf32>
    %7 = vector.broadcast %6 : vector<1x256xf32> to vector<32x256xf32>
    %8 = arith.mulf %0, %7 : vector<32x256xf32>
    %c0_2 = arith.constant 0 : index
    %c0_3 = arith.constant 0 : index
    %9 = vector.load %arg2[%c0_2, %c0_3] : memref<32x256xf32, #tpu.memory_space<vmem>>, vector<32x256xf32>
    tpu.vector_store %arg2[%c0_2, %c0_3], %8 {strides = array<i32>} : memref<32x256xf32, #tpu.memory_space<vmem>>, vector<32x256xf32>,
    return
  }
  func.func @transform_0(%arg0: i32) -> (i32, i32) {
    %c0_i32 = arith.constant 0 : i32
    %c0_i32_0 = arith.constant 0 : i32
    return %c0_i32, %arg0 : i32, i32
  }
  func.func @transform_1(%arg0: i32) -> (i32, i32) {
    %c0_i32 = arith.constant 0 : i32
    %c0_i32_0 = arith.constant 0 : i32
    return %c0_i32, %arg0 : i32, i32
  }
}

</mosaic_0001>

<llo_original>
// kernel: tpu_custom_call.1
$region0: #{tpu_custom_call.1}
  #allocation0 [shape = 'u32[]', space=smem, size = 0x4, offset = 0x4, fixed_abs, tag = 'smem constant byte address 0x4 - core index']
  #allocation1 [shape = 'u32[144,128]{1,0:T(1,128)}', space=vmem, size = 0x12000, scoped, tag = 'internal scratch']
  #allocation2 [shape = 's32[1]{0}', space=sflag, size = 0x4, scoped, tag = 'scoped memory for tpu_custom_call.1']
  #allocation3 [shape = 's32[1]{0:T(128)S(6)}', space=smem, size = 0x200, scoped, tag = 'prefetched SMEM operand 0']
  %s0 = inlined_call_operand.<no memory space> [shape: s32[1], index: 0, kind: input, shape index: {}]
  %s1 = inlined_call_operand.hbm [shape: f32[32,256], index: 1, kind: output, shape index: {}]
  %s2 = sld [smem:[#allocation0]]
  $region10: #{tpu_custom_call.1} parent=0
    _
  %s4 = ssub.s32 1, %s2
  %s5 = scalar_select 0, %s4, %s2
  %6 = sst [smem:[#allocation3]] %s0
  $region1: #{tpu_custom_call.1} parent=0
    #allocation4 [shape = 'u8[32768]{0}', space=vmem, size = 0x8000, scoped, tag = 'output window, operand 0, single buffered']
    #allocation5 [shape = 's32[1]{0}', space=sflag, size = 0x4, scoped, tag = 'scoped memory for tpu_custom_call.1']
    %7 = vsyncpa [#allocation5], 0
    %s8 = sld [smem:[#allocation3]]
    %s9 = sadd.s32 %s8, 0
    %v10 = vlaneseq
    %v11 = vstv %s9
    %v12 = vxor.u32 %v11, %v11
    %v13 = vxor.u32 %v12, 466688986
    %v14 = vadd.s32 %v10, %v11
    %v15 = vadd.s32 %v14, %v14
    %v16 = vshll.u32 %v14, 13
    %v17 = vshrl.u32 %v14, 19
    %v18 = vor.u32 %v16, %v17
    %v19 = vxor.u32 %v15, %v18
    %v20 = vadd.s32 %v15, %v19
    %v21 = vshll.u32 %v19, 15
    %v22 = vshrl.u32 %v19, 17
    %v23 = vor.u32 %v21, %v22
    %v24 = vxor.u32 %v20, %v23
    %v25 = vadd.s32 %v20, %v24
    %v26 = vshll.u32 %v24, 26
    %v27 = vshrl.u32 %v24, 6
    %v28 = vor.u32 %v26, %v27
    %v29 = vxor.u32 %v25, %v28
    %v30 = vadd.s32 %v25, %v29
    %v31 = vshll.u32 %v29, 6
    %v32 = vshrl.u32 %v29, 26
    %v33 = vor.u32 %v31, %v32
    %v34 = vxor.u32 %v30, %v33
    %v35 = vadd.s32 %v30, %v11
    %v36 = vadd.s32 %v34, %v13
    %v37 = vadd.s32 %v36, 1
    %v38 = vadd.s32 %v35, %v37
    %v39 = vshll.u32 %v37, 17
    %v40 = vshrl.u32 %v37, 15
    %v41 = vor.u32 %v39, %v40
    %v42 = vxor.u32 %v38, %v41
    %v43 = vadd.s32 %v38, %v42
    %v44 = vshll.u32 %v42, 29
    %v45 = vshrl.u32 %v42, 3
    %v46 = vor.u32 %v44, %v45
    %v47 = vxor.u32 %v43, %v46
    %v48 = vadd.s32 %v43, %v47
    %v49 = vshll.u32 %v47, 16
    %v50 = vshrl.u32 %v47, 16
    %v51 = vor.u32 %v49, %v50
    %v52 = vxor.u32 %v48, %v51
    %v53 = vadd.s32 %v48, %v52
    %v54 = vshll.u32 %v52, 24
    %v55 = vshrl.u32 %v52, 8
    %v56 = vor.u32 %v54, %v55
    %v57 = vxor.u32 %v53, %v56
    %v58 = vadd.s32 %v53, %v13
    %v59 = vadd.s32 %v57, %v11
    %v60 = vadd.s32 %v59, 2
    %v61 = vadd.s32 %v58, %v60
    %v62 = vshll.u32 %v60, 13
    %v63 = vshrl.u32 %v60, 19
    %v64 = vor.u32 %v62, %v63
    %v65 = vxor.u32 %v61, %v64
    %v66 = vadd.s32 %v61, %v65
    %v67 = vshll.u32 %v65, 15
    %v68 = vshrl.u32 %v65, 17
    %v69 = vor.u32 %v67, %v68
    %v70 = vxor.u32 %v66, %v69
    %v71 = vadd.s32 %v66, %v70
    %v72 = vshll.u32 %v70, 26
    %v73 = vshrl.u32 %v70, 6
    %v74 = vor.u32 %v72, %v73
    %v75 = vxor.u32 %v71, %v74
    %v76 = vadd.s32 %v71, %v75
    %v77 = vshll.u32 %v75, 6
    %v78 = vshrl.u32 %v75, 26
    %v79 = vor.u32 %v77, %v78
    %v80 = vxor.u32 %v76, %v79
    %v81 = vadd.s32 %v76, %v11
    %v82 = vadd.s32 %v80, %v11
    %v83 = vadd.s32 %v82, 3
    %v84 = vadd.s32 %v81, %v83
    %v85 = vshll.u32 %v83, 17
    %v86 = vshrl.u32 %v83, 15
    %v87 = vor.u32 %v85, %v86
    %v88 = vxor.u32 %v84, %v87
    %v89 = vadd.s32 %v84, %v88
    %v90 = vshll.u32 %v88, 29
    %v91 = vshrl.u32 %v88, 3
    %v92 = vor.u32 %v90, %v91
    %v93 = vxor.u32 %v89, %v92
    %v94 = vadd.s32 %v89, %v93
    %v95 = vshll.u32 %v93, 16
    %v96 = vshrl.u32 %v93, 16
    %v97 = vor.u32 %v95, %v96
    %v98 = vxor.u32 %v94, %v97
    %v99 = vadd.s32 %v94, %v98
    %v100 = vshll.u32 %v98, 24
    %v101 = vshrl.u32 %v98, 8
    %v102 = vor.u32 %v100, %v101
    %v103 = vxor.u32 %v99, %v102
    %v104 = vadd.s32 %v99, %v11
    %v105 = vadd.s32 %v103, %v13
    %v106 = vadd.s32 %v105, 4
    %v107 = vadd.s32 %v104, %v106
    %v108 = vshll.u32 %v106, 13
    %v109 = vshrl.u32 %v106, 19
    %v110 = vor.u32 %v108, %v109
    %v111 = vxor.u32 %v107, %v110
    %v112 = vadd.s32 %v107, %v111
    %v113 = vshll.u32 %v111, 15
    %v114 = vshrl.u32 %v111, 17
    %v115 = vor.u32 %v113, %v114
    %v116 = vxor.u32 %v112, %v115
    %v117 = vadd.s32 %v112, %v116
    %v118 = vshll.u32 %v116, 26
    %v119 = vshrl.u32 %v116, 6
    %v120 = vor.u32 %v118, %v119
    %v121 = vxor.u32 %v117, %v120
    %v122 = vadd.s32 %v117, %v121
    %v123 = vshll.u32 %v121, 6
    %v124 = vshrl.u32 %v121, 26
    %v125 = vor.u32 %v123, %v124
    %v126 = vxor.u32 %v122, %v125
    %v127 = vadd.s32 %v122, %v13
    %v128 = vadd.s32 %v126, %v11
    %v129 = vadd.s32 %v128, 5
    %v130 = vxor.u32 %v127, %v129
    %131 = set.rngseed %v130
    %v132 = vrng
    %v133 = vrng
    %v134 = vrng
    %v135 = vrng
    %v136 = vrng
    %v137 = vrng
    %v138 = vrng
    %v139 = vrng
    %v140 = vshrl.u32 %v132, 9
    %v141 = vshrl.u32 %v133, 9
    %v142 = vshrl.u32 %v134, 9
    %v143 = vshrl.u32 %v135, 9
    %v144 = vshrl.u32 %v136, 9
    %v145 = vshrl.u32 %v137, 9
    %v146 = vshrl.u32 %v138, 9
    %v147 = vshrl.u32 %v139, 9
    %v148 = vor.u32 %v140, 1065353216
    %v149 = vor.u32 %v141, 1065353216
    %v150 = vor.u32 %v142, 1065353216
    %v151 = vor.u32 %v143, 1065353216
    %v152 = vor.u32 %v144, 1065353216
    %v153 = vor.u32 %v145, 1065353216
    %v154 = vor.u32 %v146, 1065353216
    %v155 = vor.u32 %v147, 1065353216
    %v164 = vsub.f32 %v148, 1.0
    %v165 = vsub.f32 %v149, 1.0
    %v166 = vsub.f32 %v150, 1.0
    %v167 = vsub.f32 %v151, 1.0
    %v168 = vsub.f32 %v152, 1.0
    %v169 = vsub.f32 %v153, 1.0
    %v170 = vsub.f32 %v154, 1.0
    %v171 = vsub.f32 %v155, 1.0
    %v172 = vmul.f32 %v164, 2.0
    %v173 = vmul.f32 %v165, 2.0
    %v174 = vmul.f32 %v166, 2.0
    %v175 = vmul.f32 %v167, 2.0
    %v176 = vmul.f32 %v168, 2.0
    %v177 = vmul.f32 %v169, 2.0
    %v178 = vmul.f32 %v170, 2.0
    %v179 = vmul.f32 %v171, 2.0
    %v180 = vadd.f32 %v172, -0.99999994
    %v181 = vadd.f32 %v173, -0.99999994
    %v182 = vadd.f32 %v174, -0.99999994
    %v183 = vadd.f32 %v175, -0.99999994
    %v184 = vadd.f32 %v176, -0.99999994
    %v185 = vadd.f32 %v177, -0.99999994
    %v186 = vadd.f32 %v178, -0.99999994
    %v187 = vadd.f32 %v179, -0.99999994
    %v188 = vmax.f32 %v180, -0.99999994
    %v189 = vmax.f32 %v181, -0.99999994
    %v190 = vmax.f32 %v182, -0.99999994
    %v191 = vmax.f32 %v183, -0.99999994
    %v192 = vmax.f32 %v184, -0.99999994
    %v193 = vmax.f32 %v185, -0.99999994
    %v194 = vmax.f32 %v186, -0.99999994
    %v195 = vmax.f32 %v187, -0.99999994
    %v196 = vsub.f32 0.0, %v188
    %v197 = vsub.f32 0.0, %v189
    %v198 = vsub.f32 0.0, %v190
    %v199 = vsub.f32 0.0, %v191
    %v200 = vsub.f32 0.0, %v192
    %v201 = vsub.f32 0.0, %v193
    %v202 = vsub.f32 0.0, %v194
    %v203 = vsub.f32 0.0, %v195
    %v204 = vmul.f32 %v188, %v196
    %v205 = vmul.f32 %v189, %v197
    %v206 = vmul.f32 %v190, %v198
    %v207 = vmul.f32 %v191, %v199
    %v208 = vmul.f32 %v192, %v200
    %v209 = vmul.f32 %v193, %v201
    %v210 = vmul.f32 %v194, %v202
    %v211 = vmul.f32 %v195, %v203
    %v212 = vadd.f32 %v204, 1.0
    %v213 = vlog2.pop %v212
    %v214 = vmul.f32 %v213, 0.6931472
    %v215 = vmul.f32 -0.5, %v204
    %v216 = vadd.f32 %v215, 1.0
    %v217 = vmul.f32 %v216, %v204
    %v218 = vand.u32 2147483647, %v204
    %vm219 = vcmp.lt.f32.partialorder %v218, 0.0004427343
    %v220 = vsel %vm219, %v217, %v214
    %v221 = vadd.f32 %v205, 1.0
    %v222 = vlog2.pop %v221
    %v223 = vmul.f32 %v222, 0.6931472
    %v224 = vmul.f32 -0.5, %v205
    %v225 = vadd.f32 %v224, 1.0
    %v226 = vmul.f32 %v225, %v205
    %v227 = vand.u32 2147483647, %v205
    %vm228 = vcmp.lt.f32.partialorder %v227, 0.0004427343
    %v229 = vsel %vm228, %v226, %v223
    %v230 = vadd.f32 %v206, 1.0
    %v231 = vlog2.pop %v230
    %v232 = vmul.f32 %v231, 0.6931472
    %v233 = vmul.f32 -0.5, %v206
    %v234 = vadd.f32 %v233, 1.0
    %v235 = vmul.f32 %v234, %v206
    %v236 = vand.u32 2147483647, %v206
    %vm237 = vcmp.lt.f32.partialorder %v236, 0.0004427343
    %v238 = vsel %vm237, %v235, %v232
    %v239 = vadd.f32 %v207, 1.0
    %v240 = vlog2.pop %v239
    %v241 = vmul.f32 %v240, 0.6931472
    %v242 = vmul.f32 -0.5, %v207
    %v243 = vadd.f32 %v242, 1.0
    %v244 = vmul.f32 %v243, %v207
    %v245 = vand.u32 2147483647, %v207
    %vm246 = vcmp.lt.f32.partialorder %v245, 0.0004427343
    %v247 = vsel %vm246, %v244, %v241
    %v248 = vadd.f32 %v208, 1.0
    %v249 = vlog2.pop %v248
    %v250 = vmul.f32 %v249, 0.6931472
    %v251 = vmul.f32 -0.5, %v208
    %v252 = vadd.f32 %v251, 1.0
    %v253 = vmul.f32 %v252, %v208
    %v254 = vand.u32 2147483647, %v208
    %vm255 = vcmp.lt.f32.partialorder %v254, 0.0004427343
    %v256 = vsel %vm255, %v253, %v250
    %v257 = vadd.f32 %v209, 1.0
    %v258 = vlog2.pop %v257
    %v259 = vmul.f32 %v258, 0.6931472
    %v260 = vmul.f32 -0.5, %v209
    %v261 = vadd.f32 %v260, 1.0
    %v262 = vmul.f32 %v261, %v209
    %v263 = vand.u32 2147483647, %v209
    %vm264 = vcmp.lt.f32.partialorder %v263, 0.0004427343
    %v265 = vsel %vm264, %v262, %v259
    %v266 = vadd.f32 %v210, 1.0
    %v267 = vlog2.pop %v266
    %v268 = vmul.f32 %v267, 0.6931472
    %v269 = vmul.f32 -0.5, %v210
    %v270 = vadd.f32 %v269, 1.0
    %v271 = vmul.f32 %v270, %v210
    %v272 = vand.u32 2147483647, %v210
    %vm273 = vcmp.lt.f32.partialorder %v272, 0.0004427343
    %v274 = vsel %vm273, %v271, %v268
    %v275 = vadd.f32 %v211, 1.0
    %v276 = vlog2.pop %v275
    %v277 = vmul.f32 %v276, 0.6931472
    %v278 = vmul.f32 -0.5, %v211
    %v279 = vadd.f32 %v278, 1.0
    %v280 = vmul.f32 %v279, %v211
    %v281 = vand.u32 2147483647, %v211
    %vm282 = vcmp.lt.f32.partialorder %v281, 0.0004427343
    %v283 = vsel %vm282, %v280, %v277
    %v284 = vsub.f32 0.0, %v220
    %v285 = vsub.f32 0.0, %v229
    %v286 = vsub.f32 0.0, %v238
    %v287 = vsub.f32 0.0, %v247
    %v288 = vsub.f32 0.0, %v256
    %v289 = vsub.f32 0.0, %v265
    %v290 = vsub.f32 0.0, %v274
    %v291 = vsub.f32 0.0, %v283
    %vm292 = vcmp.lt.f32.partialorder %v284, 5.0
    %vm293 = vcmp.lt.f32.partialorder %v285, 5.0
    %vm294 = vcmp.lt.f32.partialorder %v286, 5.0
    %vm295 = vcmp.lt.f32.partialorder %v287, 5.0
    %vm296 = vcmp.lt.f32.partialorder %v288, 5.0
    %vm297 = vcmp.lt.f32.partialorder %v289, 5.0
    %vm298 = vcmp.lt.f32.partialorder %v290, 5.0
    %vm299 = vcmp.lt.f32.partialorder %v291, 5.0
    %v300 = vsub.f32 %v284, 2.5
    %v301 = vsub.f32 %v285, 2.5
    %v302 = vsub.f32 %v286, 2.5
    %v303 = vsub.f32 %v287, 2.5
    %v304 = vsub.f32 %v288, 2.5
    %v305 = vsub.f32 %v289, 2.5
    %v306 = vsub.f32 %v290, 2.5
    %v307 = vsub.f32 %v291, 2.5
    %v308 = vrsqrt.pop %v284
    %v309 = vmul.f32 %v284, %v308
    %vm310 = vcmp.eq.f32.partialorder %v284, inf
    %v311 = vsel %vm310, %v284, %v309
    %vm312 = vcmp.eq.f32.partialorder %v284, 0.0
    %v313 = vand.u32 %v284, 2147483648
    %v314 = vsel %vm312, %v313, %v311
    %v315 = vrsqrt.pop %v285
    %v316 = vmul.f32 %v285, %v315
    %vm317 = vcmp.eq.f32.partialorder %v285, inf
    %v318 = vsel %vm317, %v285, %v316
    %vm319 = vcmp.eq.f32.partialorder %v285, 0.0
    %v320 = vand.u32 %v285, 2147483648
    %v321 = vsel %vm319, %v320, %v318
    %v322 = vrsqrt.pop %v286
    %v323 = vmul.f32 %v286, %v322
    %vm324 = vcmp.eq.f32.partialorder %v286, inf
    %v325 = vsel %vm324, %v286, %v323
    %vm326 = vcmp.eq.f32.partialorder %v286, 0.0
    %v327 = vand.u32 %v286, 2147483648
    %v328 = vsel %vm326, %v327, %v325
    %v329 = vrsqrt.pop %v287
    %v330 = vmul.f32 %v287, %v329
    %vm331 = vcmp.eq.f32.partialorder %v287, inf
    %v332 = vsel %vm331, %v287, %v330
    %vm333 = vcmp.eq.f32.partialorder %v287, 0.0
    %v334 = vand.u32 %v287, 2147483648
    %v335 = vsel %vm333, %v334, %v332
    %v336 = vrsqrt.pop %v288
    %v337 = vmul.f32 %v288, %v336
    %vm338 = vcmp.eq.f32.partialorder %v288, inf
    %v339 = vsel %vm338, %v288, %v337
    %vm340 = vcmp.eq.f32.partialorder %v288, 0.0
    %v341 = vand.u32 %v288, 2147483648
    %v342 = vsel %vm340, %v341, %v339
    %v343 = vrsqrt.pop %v289
    %v344 = vmul.f32 %v289, %v343
    %vm345 = vcmp.eq.f32.partialorder %v289, inf
    %v346 = vsel %vm345, %v289, %v344
    %vm347 = vcmp.eq.f32.partialorder %v289, 0.0
    %v348 = vand.u32 %v289, 2147483648
    %v349 = vsel %vm347, %v348, %v346
    %v350 = vrsqrt.pop %v290
    %v351 = vmul.f32 %v290, %v350
    %vm352 = vcmp.eq.f32.partialorder %v290, inf
    %v353 = vsel %vm352, %v290, %v351
    %vm354 = vcmp.eq.f32.partialorder %v290, 0.0
    %v355 = vand.u32 %v290, 2147483648
    %v356 = vsel %vm354, %v355, %v353
    %v357 = vrsqrt.pop %v291
    %v358 = vmul.f32 %v291, %v357
    %vm359 = vcmp.eq.f32.partialorder %v291, inf
    %v360 = vsel %vm359, %v291, %v358
    %vm361 = vcmp.eq.f32.partialorder %v291, 0.0
    %v362 = vand.u32 %v291, 2147483648
    %v363 = vsel %vm361, %v362, %v360
    %v364 = vsub.f32 %v314, 3.0
    %v365 = vsub.f32 %v321, 3.0
    %v366 = vsub.f32 %v328, 3.0
    %v367 = vsub.f32 %v335, 3.0
    %v368 = vsub.f32 %v342, 3.0
    %v369 = vsub.f32 %v349, 3.0
    %v370 = vsub.f32 %v356, 3.0
    %v371 = vsub.f32 %v363, 3.0
    %v372 = vsel %vm292, %v300, %v364
    %v373 = vsel %vm293, %v301, %v365
    %v374 = vsel %vm294, %v302, %v366
    %v375 = vsel %vm295, %v303, %v367
    %v376 = vsel %vm296, %v304, %v368
    %v377 = vsel %vm297, %v305, %v369
    %v378 = vsel %vm298, %v306, %v370
    %v379 = vsel %vm299, %v307, %v371
    %v380 = vsel %vm292, 2.8102264e-08, -0.00020021426
    %v381 = vsel %vm293, 2.8102264e-08, -0.00020021426
    %v382 = vsel %vm294, 2.8102264e-08, -0.00020021426
    %v383 = vsel %vm295, 2.8102264e-08, -0.00020021426
    %v384 = vsel %vm296, 2.8102264e-08, -0.00020021426
    %v385 = vsel %vm297, 2.8102264e-08, -0.00020021426
    %v386 = vsel %vm298, 2.8102264e-08, -0.00020021426
    %v387 = vsel %vm299, 2.8102264e-08, -0.00020021426
    %v388 = vsel %vm292, 3.4327394e-07, 0.00010095056
    %v389 = vsel %vm293, 3.4327394e-07, 0.00010095056
    %v390 = vsel %vm294, 3.4327394e-07, 0.00010095056
    %v391 = vsel %vm295, 3.4327394e-07, 0.00010095056
    %v392 = vsel %vm296, 3.4327394e-07, 0.00010095056
    %v393 = vsel %vm297, 3.4327394e-07, 0.00010095056
    %v394 = vsel %vm298, 3.4327394e-07, 0.00010095056
    %v395 = vsel %vm299, 3.4327394e-07, 0.00010095056
    %v396 = vmul.f32 %v380, %v372
    %v397 = vmul.f32 %v381, %v373
    %v398 = vmul.f32 %v382, %v374
    %v399 = vmul.f32 %v383, %v375
    %v400 = vmul.f32 %v384, %v376
    %v401 = vmul.f32 %v385, %v377
    %v402 = vmul.f32 %v386, %v378
    %v403 = vmul.f32 %v387, %v379
    %v404 = vadd.f32 %v388, %v396
    %v405 = vadd.f32 %v389, %v397
    %v406 = vadd.f32 %v390, %v398
    %v407 = vadd.f32 %v391, %v399
    %v408 = vadd.f32 %v392, %v400
    %v409 = vadd.f32 %v393, %v401
    %v410 = vadd.f32 %v394, %v402
    %v411 = vadd.f32 %v395, %v403
    %v412 = vsel %vm292, -3.5233877e-06, 0.0013493432
    %v413 = vsel %vm293, -3.5233877e-06, 0.0013493432
    %v414 = vsel %vm294, -3.5233877e-06, 0.0013493432
    %v415 = vsel %vm295, -3.5233877e-06, 0.0013493432
    %v416 = vsel %vm296, -3.5233877e-06, 0.0013493432
    %v417 = vsel %vm297, -3.5233877e-06, 0.0013493432
    %v418 = vsel %vm298, -3.5233877e-06, 0.0013493432
    %v419 = vsel %vm299, -3.5233877e-06, 0.0013493432
    %v420 = vmul.f32 %v404, %v372
    %v421 = vmul.f32 %v405, %v373
    %v422 = vmul.f32 %v406, %v374
    %v423 = vmul.f32 %v407, %v375
    %v424 = vmul.f32 %v408, %v376
    %v425 = vmul.f32 %v409, %v377
    %v426 = vmul.f32 %v410, %v378
    %v427 = vmul.f32 %v411, %v379
    %v428 = vadd.f32 %v412, %v420
    %v429 = vadd.f32 %v413, %v421
    %v430 = vadd.f32 %v414, %v422
    %v431 = vadd.f32 %v415, %v423
    %v432 = vadd.f32 %v416, %v424
    %v433 = vadd.f32 %v417, %v425
    %v434 = vadd.f32 %v418, %v426
    %v435 = vadd.f32 %v419, %v427
    %v436 = vsel %vm292, -4.3915065e-06, -0.0036734284
    %v437 = vsel %vm293, -4.3915065e-06, -0.0036734284
    %v438 = vsel %vm294, -4.3915065e-06, -0.0036734284
    %v439 = vsel %vm295, -4.3915065e-06, -0.0036734284
    %v440 = vsel %vm296, -4.3915065e-06, -0.0036734284
    %v441 = vsel %vm297, -4.3915065e-06, -0.0036734284
    %v442 = vsel %vm298, -4.3915065e-06, -0.0036734284
    %v443 = vsel %vm299, -4.3915065e-06, -0.0036734284
    %v444 = vmul.f32 %v428, %v372
    %v445 = vmul.f32 %v429, %v373
    %v446 = vmul.f32 %v430, %v374
    %v447 = vmul.f32 %v431, %v375
    %v448 = vmul.f32 %v432, %v376
    %v449 = vmul.f32 %v433, %v377
    %v450 = vmul.f32 %v434, %v378
    %v451 = vmul.f32 %v435, %v379
    %v452 = vadd.f32 %v436, %v444
    %v453 = vadd.f32 %v437, %v445
    %v454 = vadd.f32 %v438, %v446
    %v455 = vadd.f32 %v439, %v447
    %v456 = vadd.f32 %v440, %v448
    %v457 = vadd.f32 %v441, %v449
    %v458 = vadd.f32 %v442, %v450
    %v459 = vadd.f32 %v443, %v451
    %v460 = vsel %vm292, 0.00021858087, 0.0057395077
    %v461 = vsel %vm293, 0.00021858087, 0.0057395077
    %v462 = vsel %vm294, 0.00021858087, 0.0057395077
    %v463 = vsel %vm295, 0.00021858087, 0.0057395077
    %v464 = vsel %vm296, 0.00021858087, 0.0057395077
    %v465 = vsel %vm297, 0.00021858087, 0.0057395077
    %v466 = vsel %vm298, 0.00021858087, 0.0057395077
    %v467 = vsel %vm299, 0.00021858087, 0.0057395077
    %v468 = vmul.f32 %v452, %v372
    %v469 = vmul.f32 %v453, %v373
    %v470 = vmul.f32 %v454, %v374
    %v471 = vmul.f32 %v455, %v375
    %v472 = vmul.f32 %v456, %v376
    %v473 = vmul.f32 %v457, %v377
    %v474 = vmul.f32 %v458, %v378
    %v475 = vmul.f32 %v459, %v379
    %v476 = vadd.f32 %v460, %v468
    %v477 = vadd.f32 %v461, %v469
    %v478 = vadd.f32 %v462, %v470
    %v479 = vadd.f32 %v463, %v471
    %v480 = vadd.f32 %v464, %v472
    %v481 = vadd.f32 %v465, %v473
    %v482 = vadd.f32 %v466, %v474
    %v483 = vadd.f32 %v467, %v475
    %v484 = vsel %vm292, -0.001253725, -0.0076224613
    %v485 = vsel %vm293, -0.001253725, -0.0076224613
    %v486 = vsel %vm294, -0.001253725, -0.0076224613
    %v487 = vsel %vm295, -0.001253725, -0.0076224613
    %v488 = vsel %vm296, -0.001253725, -0.0076224613
    %v489 = vsel %vm297, -0.001253725, -0.0076224613
    %v490 = vsel %vm298, -0.001253725, -0.0076224613
    %v491 = vsel %vm299, -0.001253725, -0.0076224613
    %v492 = vmul.f32 %v476, %v372
    %v493 = vmul.f32 %v477, %v373
    %v494 = vmul.f32 %v478, %v374
    %v495 = vmul.f32 %v479, %v375
    %v496 = vmul.f32 %v480, %v376
    %v497 = vmul.f32 %v481, %v377
    %v498 = vmul.f32 %v482, %v378
    %v499 = vmul.f32 %v483, %v379
    %v500 = vadd.f32 %v484, %v492
    %v501 = vadd.f32 %v485, %v493
    %v502 = vadd.f32 %v486, %v494
    %v503 = vadd.f32 %v487, %v495
    %v504 = vadd.f32 %v488, %v496
    %v505 = vadd.f32 %v489, %v497
    %v506 = vadd.f32 %v490, %v498
    %v507 = vadd.f32 %v491, %v499
    %v508 = vsel %vm292, -0.0041776816, 0.0094388705
    %v509 = vsel %vm293, -0.0041776816, 0.0094388705
    %v510 = vsel %vm294, -0.0041776816, 0.0094388705
    %v511 = vsel %vm295, -0.0041776816, 0.0094388705
    %v512 = vsel %vm296, -0.0041776816, 0.0094388705
    %v513 = vsel %vm297, -0.0041776816, 0.0094388705
    %v514 = vsel %vm298, -0.0041776816, 0.0094388705
    %v515 = vsel %vm299, -0.0041776816, 0.0094388705
    %v516 = vmul.f32 %v500, %v372
    %v517 = vmul.f32 %v501, %v373
    %v518 = vmul.f32 %v502, %v374
    %v519 = vmul.f32 %v503, %v375
    %v520 = vmul.f32 %v504, %v376
    %v521 = vmul.f32 %v505, %v377
    %v522 = vmul.f32 %v506, %v378
    %v523 = vmul.f32 %v507, %v379
    %v524 = vadd.f32 %v508, %v516
    %v525 = vadd.f32 %v509, %v517
    %v526 = vadd.f32 %v510, %v518
    %v527 = vadd.f32 %v511, %v519
    %v528 = vadd.f32 %v512, %v520
    %v529 = vadd.f32 %v513, %v521
    %v530 = vadd.f32 %v514, %v522
    %v531 = vadd.f32 %v515, %v523
    %v532 = vsel %vm292, 0.24664073, 1.001674
    %v533 = vsel %vm293, 0.24664073, 1.001674
    %v534 = vsel %vm294, 0.24664073, 1.001674
    %v535 = vsel %vm295, 0.24664073, 1.001674
    %v536 = vsel %vm296, 0.24664073, 1.001674
    %v537 = vsel %vm297, 0.24664073, 1.001674
    %v538 = vsel %vm298, 0.24664073, 1.001674
    %v539 = vsel %vm299, 0.24664073, 1.001674
    %v540 = vmul.f32 %v524, %v372
    %v541 = vmul.f32 %v525, %v373
    %v542 = vmul.f32 %v526, %v374
    %v543 = vmul.f32 %v527, %v375
    %v544 = vmul.f32 %v528, %v376
    %v545 = vmul.f32 %v529, %v377
    %v546 = vmul.f32 %v530, %v378
    %v547 = vmul.f32 %v531, %v379
    %v548 = vadd.f32 %v532, %v540
    %v549 = vadd.f32 %v533, %v541
    %v550 = vadd.f32 %v534, %v542
    %v551 = vadd.f32 %v535, %v543
    %v552 = vadd.f32 %v536, %v544
    %v553 = vadd.f32 %v537, %v545
    %v554 = vadd.f32 %v538, %v546
    %v555 = vadd.f32 %v539, %v547
    %v556 = vsel %vm292, 1.5014094, 2.8329768
    %v557 = vsel %vm293, 1.5014094, 2.8329768
    %v558 = vsel %vm294, 1.5014094, 2.8329768
    %v559 = vsel %vm295, 1.5014094, 2.8329768
    %v560 = vsel %vm296, 1.5014094, 2.8329768
    %v561 = vsel %vm297, 1.5014094, 2.8329768
    %v562 = vsel %vm298, 1.5014094, 2.8329768
    %v563 = vsel %vm299, 1.5014094, 2.8329768
    %v564 = vmul.f32 %v548, %v372
    %v565 = vmul.f32 %v549, %v373
    %v566 = vmul.f32 %v550, %v374
    %v567 = vmul.f32 %v551, %v375
    %v568 = vmul.f32 %v552, %v376
    %v569 = vmul.f32 %v553, %v377
    %v570 = vmul.f32 %v554, %v378
    %v571 = vmul.f32 %v555, %v379
    %v572 = vadd.f32 %v556, %v564
    %v573 = vadd.f32 %v557, %v565
    %v574 = vadd.f32 %v558, %v566
    %v575 = vadd.f32 %v559, %v567
    %v576 = vadd.f32 %v560, %v568
    %v577 = vadd.f32 %v561, %v569
    %v578 = vadd.f32 %v562, %v570
    %v579 = vadd.f32 %v563, %v571
    %v580 = vand.u32 2147483647, %v188
    %v581 = vand.u32 2147483647, %v189
    %v582 = vand.u32 2147483647, %v190
    %v583 = vand.u32 2147483647, %v191
    %v584 = vand.u32 2147483647, %v192
    %v585 = vand.u32 2147483647, %v193
    %v586 = vand.u32 2147483647, %v194
    %v587 = vand.u32 2147483647, %v195
    %vm588 = vcmp.eq.f32.partialorder %v580, 1.0
    %vm589 = vcmp.eq.f32.partialorder %v581, 1.0
    %vm590 = vcmp.eq.f32.partialorder %v582, 1.0
    %vm591 = vcmp.eq.f32.partialorder %v583, 1.0
    %vm592 = vcmp.eq.f32.partialorder %v584, 1.0
    %vm593 = vcmp.eq.f32.partialorder %v585, 1.0
    %vm594 = vcmp.eq.f32.partialorder %v586, 1.0
    %vm595 = vcmp.eq.f32.partialorder %v587, 1.0
    %v596 = vmul.f32 %v188, inf
    %v597 = vmul.f32 %v189, inf
    %v598 = vmul.f32 %v190, inf
    %v599 = vmul.f32 %v191, inf
    %v600 = vmul.f32 %v192, inf
    %v601 = vmul.f32 %v193, inf
    %v602 = vmul.f32 %v194, inf
    %v603 = vmul.f32 %v195, inf
    %v604 = vmul.f32 %v572, %v188
    %v605 = vmul.f32 %v573, %v189
    %v606 = vmul.f32 %v574, %v190
    %v607 = vmul.f32 %v575, %v191
    %v608 = vmul.f32 %v576, %v192
    %v609 = vmul.f32 %v577, %v193
    %v610 = vmul.f32 %v578, %v194
    %v611 = vmul.f32 %v579, %v195
    %v612 = vsel %vm588, %v596, %v604
    %v613 = vsel %vm589, %v597, %v605
    %v614 = vsel %vm590, %v598, %v606
    %v615 = vsel %vm591, %v599, %v607
    %v616 = vsel %vm592, %v600, %v608
    %v617 = vsel %vm593, %v601, %v609
    %v618 = vsel %vm594, %v602, %v610
    %v619 = vsel %vm595, %v603, %v611
    %v620 = vmul.f32 %v612, 1.4142135
    %v621 = vmul.f32 %v613, 1.4142135
    %v622 = vmul.f32 %v614, 1.4142135
    %v623 = vmul.f32 %v615, 1.4142135
    %v624 = vmul.f32 %v616, 1.4142135
    %v625 = vmul.f32 %v617, 1.4142135
    %v626 = vmul.f32 %v618, 1.4142135
    %v627 = vmul.f32 %v619, 1.4142135
    %v628 = vmul.f32 %v620, %v620
    %v629 = vmul.f32 %v621, %v621
    %v630 = vmul.f32 %v622, %v622
    %v631 = vmul.f32 %v623, %v623
    %v632 = vmul.f32 %v624, %v624
    %v633 = vmul.f32 %v625, %v625
    %v634 = vmul.f32 %v626, %v626
    %v635 = vmul.f32 %v627, %v627
    %v636 = vadd.f32 %v628, %v630
    %v637 = vadd.f32 %v636, %v632
    %v638 = vadd.f32 %v637, %v634
    %v639 = vrot.slane %v638, 4
    %v640 = vadd.f32 %v638, %v639
    %v641 = vrot.slane %v640, 2
    %v642 = vadd.f32 %v640, %v641
    %v643 = vrot.slane %v642, 1
    %v644 = vadd.f32 %v642, %v643
    %v645 = vadd.f32 %v629, %v631
    %v646 = vadd.f32 %v645, %v633
    %v647 = vadd.f32 %v646, %v635
    %v648 = vrot.slane %v647, 4
    %v649 = vadd.f32 %v647, %v648
    %v650 = vrot.slane %v649, 2
    %v651 = vadd.f32 %v649, %v650
    %v652 = vrot.slane %v651, 1
    %v653 = vadd.f32 %v651, %v652
    %v654 = vmax.f32 %v644, 1e-24
    %v655 = vmax.f32 %v653, 1e-24
    %v656 = vrsqrt.pop %v654
    %v657 = vrsqrt.pop %v655
    %v658 = vmul.f32 %v620, %v656
    %v659 = vmul.f32 %v621, %v657
    %v660 = vmul.f32 %v622, %v656
    %v661 = vmul.f32 %v623, %v657
    %v662 = vmul.f32 %v624, %v656
    %v663 = vmul.f32 %v625, %v657
    %v664 = vmul.f32 %v626, %v656
    %v665 = vmul.f32 %v627, %v657
    %666 = vst [vmem:[#allocation4] sm:$0xff] %v658
    %667 = vst [vmem:[#allocation4 + $0x8] sm:$0xff] %v659
    %668 = vst [vmem:[#allocation4 + $0x10] sm:$0xff] %v660
    %669 = vst [vmem:[#allocation4 + $0x18] sm:$0xff] %v661
    %670 = vst [vmem:[#allocation4 + $0x20] sm:$0xff] %v662
    %671 = vst [vmem:[#allocation4 + $0x28] sm:$0xff] %v663
    %672 = vst [vmem:[#allocation4 + $0x30] sm:$0xff] %v664
    %673 = vst [vmem:[#allocation4 + $0x38] sm:$0xff] %v665
    // Predicated region
    $region2: #{tpu_custom_call.1} parent=1 // pred_check
      _
    $region3: #{tpu_custom_call.1} parent=1 // pred_check_branch
      %675 = sbr.rel (0) target = $region5
    $region4: #{tpu_custom_call.1} parent=1 // pred_region
      %s677 = ssub.s32 1024, 1024
      %678 = vsyncadd [#allocation5], %s677
      %s679 = sshll.u32 [#allocation4], 4
      %s680 = int_to_ptr.vmem [resolvable:$true] %s679
      %685 = dma.vmem_to_hbm [thread:$0]  %s680, 1024, %s1, [#allocation5], 256, 256, 16
    $region5: #{tpu_custom_call.1} parent=1 // pred_fallthru
      _
    // Predicated region
    $region6: #{tpu_custom_call.1} parent=1 // pred_check
      _
    $region7: #{tpu_custom_call.1} parent=1 // pred_check_branch
      %687 = sbr.rel (0) target = $region9
    $region8: #{tpu_custom_call.1} parent=1 // pred_region
      %688 = dma.done [#allocation5], 1024
    $region9: #{tpu_custom_call.1} parent=1 // pred_fallthru
      _
    %689 = vsyncpa [#allocation5], 1

// kernel: tpu_custom_call.1
$region0: #{tpu_custom_call.1}
  #allocation0 [shape = 'u32[]', space=smem, size = 0x4, offset = 0x4, fixed_abs, tag = 'smem constant byte address 0x4 - core index']
  #allocation1 [shape = 'u32[144,128]{1,0:T(1,128)}', space=vmem, size = 0x12000, scoped, tag = 'internal scratch']
  %s0 = inlined_call_operand.hbm [shape: f32[32,256], index: 0, kind: input, shape index: {}]
  %s1 = inlined_call_operand.hbm [shape: f32[32,256], index: 1, kind: output, shape index: {}]
  %s2 = sld [smem:[#allocation0]]
  $region18: #{tpu_custom_call.1} parent=0
    _
  %s4 = ssub.s32 1, %s2
  %s5 = scalar_select 0, %s4, %s2
  $region1: #{tpu_custom_call.1} parent=0
    #allocation2 [shape = 'u8[32768]{0}', space=vmem, size = 0x8000, scoped, tag = 'input window, operand 0, single buffered']
    #allocation3 [shape = 's32[1]{0}', space=sflag, size = 0x4, scoped, tag = 'scoped memory for tpu_custom_call.1']
    #allocation4 [shape = 's32[1]{0}', space=sflag, size = 0x4, scoped, tag = 'scoped memory for tpu_custom_call.1']
    #allocation5 [shape = 'u8[32768]{0}', space=vmem, size = 0x8000, scoped, tag = 'output window, operand 0, single buffered']
    %6 = vsyncpa [#allocation3], 0
    %7 = vsyncpa [#allocation4], 0
    // Predicated region
    $region2: #{tpu_custom_call.1} parent=1 // pred_check
      _
    $region3: #{tpu_custom_call.1} parent=1 // pred_check_branch
      %9 = sbr.rel (0) target = $region5
    $region4: #{tpu_custom_call.1} parent=1 // pred_region
      %s11 = ssub.s32 1024, 1024
      %12 = vsyncadd [#allocation3], %s11
      %s13 = sshll.u32 [#allocation2], 4
      %s14 = int_to_ptr.vmem [resolvable:$true] %s13
      %19 = dma.hbm_to_vmem [thread:$0]  %s0, 1024, %s14, [#allocation3], 256, 256, 16
    $region5: #{tpu_custom_call.1} parent=1 // pred_fallthru
      _
    // Predicated region
    $region6: #{tpu_custom_call.1} parent=1 // pred_check
      _
    $region7: #{tpu_custom_call.1} parent=1 // pred_check_branch
      %21 = sbr.rel (0) target = $region9
    $region8: #{tpu_custom_call.1} parent=1 // pred_region
      %22 = dma.done [#allocation3], 1024
    $region9: #{tpu_custom_call.1} parent=1 // pred_fallthru
      _
    %v23 = vld [vmem:[#allocation2] sm:$0xff]
    %v24 = vld [vmem:[#allocation2 + $0x8] sm:$0xff]
    %v25 = vld [vmem:[#allocation2 + $0x10] sm:$0xff]
    %v26 = vld [vmem:[#allocation2 + $0x18] sm:$0xff]
    %v27 = vld [vmem:[#allocation2 + $0x20] sm:$0xff]
    %v28 = vld [vmem:[#allocation2 + $0x28] sm:$0xff]
    %v29 = vld [vmem:[#allocation2 + $0x30] sm:$0xff]
    %v30 = vld [vmem:[#allocation2 + $0x38] sm:$0xff]
    %v31 = vmul.f32 %v23, %v23
    %v32 = vmul.f32 %v24, %v24
    %v33 = vmul.f32 %v25, %v25
    %v34 = vmul.f32 %v26, %v26
    %v35 = vmul.f32 %v27, %v27
    %v36 = vmul.f32 %v28, %v28
    %v37 = vmul.f32 %v29, %v29
    %v38 = vmul.f32 %v30, %v30
    %v39 = vadd.f32 %v31, %v33
    %v40 = vadd.f32 %v39, %v35
    %v41 = vadd.f32 %v40, %v37
    %v42 = vrot.slane %v41, 4
    %v43 = vadd.f32 %v41, %v42
    %v44 = vrot.slane %v43, 2
    %v45 = vadd.f32 %v43, %v44
    %v46 = vrot.slane %v45, 1
    %v47 = vadd.f32 %v45, %v46
    %v48 = vadd.f32 %v32, %v34
    %v49 = vadd.f32 %v48, %v36
    %v50 = vadd.f32 %v49, %v38
    %v51 = vrot.slane %v50, 4
    %v52 = vadd.f32 %v50, %v51
    %v53 = vrot.slane %v52, 2
    %v54 = vadd.f32 %v52, %v53
    %v55 = vrot.slane %v54, 1
    %v56 = vadd.f32 %v54, %v55
    %v57 = vmax.f32 %v47, 1e-24
    %v58 = vmax.f32 %v56, 1e-24
    %v59 = vrsqrt.pop %v57
    %v60 = vrsqrt.pop %v58
    %v61 = vmul.f32 %v23, %v59
    %v62 = vmul.f32 %v24, %v60
    %v63 = vmul.f32 %v25, %v59
    %v64 = vmul.f32 %v26, %v60
    %v65 = vmul.f32 %v27, %v59
    %v66 = vmul.f32 %v28, %v60
    %v67 = vmul.f32 %v29, %v59
    %v68 = vmul.f32 %v30, %v60
    %69 = vst [vmem:[#allocation5] sm:$0xff] %v61
    %70 = vst [vmem:[#allocation5 + $0x8] sm:$0xff] %v62
    %71 = vst [vmem:[#allocation5 + $0x10] sm:$0xff] %v63
    %72 = vst [vmem:[#allocation5 + $0x18] sm:$0xff] %v64
    %73 = vst [vmem:[#allocation5 + $0x20] sm:$0xff] %v65
    %74 = vst [vmem:[#allocation5 + $0x28] sm:$0xff] %v66
    %75 = vst [vmem:[#allocation5 + $0x30] sm:$0xff] %v67
    %76 = vst [vmem:[#allocation5 + $0x38] sm:$0xff] %v68
    // Predicated region
    $region10: #{tpu_custom_call.1} parent=1 // pred_check
      _
    $region11: #{tpu_custom_call.1} parent=1 // pred_check_branch
      %78 = sbr.rel (0) target = $region13
    $region12: #{tpu_custom_call.1} parent=1 // pred_region
      %s80 = ssub.s32 1024, 1024
      %81 = vsyncadd [#allocation4], %s80
      %s82 = sshll.u32 [#allocation5], 4
      %s83 = int_to_ptr.vmem [resolvable:$true] %s82
      %88 = dma.vmem_to_hbm [thread:$0]  %s83, 1024, %s1, [#allocation4], 256, 256, 16
    $region13: #{tpu_custom_call.1} parent=1 // pred_fallthru
      _
    // Predicated region
    $region14: #{tpu_custom_call.1} parent=1 // pred_check
      _
    $region15: #{tpu_custom_call.1} parent=1 // pred_check_branch
      %90 = sbr.rel (0) target = $region17
    $region16: #{tpu_custom_call.1} parent=1 // pred_region
      %91 = dma.done [#allocation4], 1024
    $region17: #{tpu_custom_call.1} parent=1 // pred_fallthru
      _
    %92 = vsyncpa [#allocation3], 1
    %93 = vsyncpa [#allocation4], 1

</llo_original>
